<compile_context>
chip_gen: v6e
topology: v6e:2x2x1
jax: 0.10.0
libtpu: 0.0.40
codegen_flags: <defaults>
</compile_context>

<pallas_src>
import functools

import jax
import jax.numpy as jnp
import numpy as np
from jax import lax
from jax.experimental import pallas as pl
from jax.experimental.pallas import tpu as pltpu

_LN2 = 0.6931471805599453  # exp(x * ln 2) == 2 ** x (avoids relying on exp2 lowering)


def _var_mix_kernel(it_ref, ln_inv_s_ref, out_ref, *,
                    factor, inv_stop_it, start_it, update_every,
                    inv_total_stages, init_log2, final_log2):
    # it_ref:       SMEM (1,)  int32   -- current iteration
    # ln_inv_s_ref: SMEM (1,)  float32 -- learnable parameter
    # out_ref:      VMEM (1,1) float32 -- mixed inv_s

    it_i = it_ref[0]                                           # scalar int32
    # Exact staged index on the scalar core.  max() keeps the operand
    # non-negative so truncating div == floor div; the it < start_it case is
    # selected away below anyway.
    rel = jnp.maximum(it_i - np.int32(start_it), np.int32(0))
    if update_every == 1:
        cur_stage_i = rel
    else:
        cur_stage_i = lax.div(rel, np.int32(update_every))

    # Broadcast scalars onto a single (1,1) vreg so all math (incl. the two
    # transcendentals) runs on the VPU/EUP f32 vector path on v5e/v6e/v7x.
    it_f = jnp.full((1, 1), it_i, dtype=jnp.int32).astype(jnp.float32)
    stage_f = jnp.full((1, 1), cur_stage_i, dtype=jnp.int32).astype(jnp.float32)
    ln_inv_s = jnp.full((1, 1), ln_inv_s_ref[0], dtype=jnp.float32)

    inv_s0 = jnp.exp(ln_inv_s * factor)                        # EUP, f32
    w0 = 1.0 - it_f * inv_stop_it

    # Staged half-life schedule for inv_s1 (branch folded into a select).
    w1 = stage_f * inv_total_stages
    log2_inv_s = jnp.where(it_f < float(start_it),
                           init_log2,
                           (1.0 - w1) * init_log2 + w1 * final_log2)
    inv_s1 = jnp.exp(log2_inv_s * _LN2)                        # == 2 ** log2_inv_s

    out_ref[...] = w0 * inv_s0 + (1.0 - w0) * inv_s1           # VPU mix


class VarSingleMixHalfLife:
    """JAX/Pallas re-implementation of the torch module's forward pass."""

    def __init__(self, ln_inv_s_init: float, ln_inv_s_factor: float = 10.0,
                 stop_it: int = 1000, start_it: int = 0,
                 final_log2_inv_s: float = 14.0, half_log2_inv_s: float = 9.0,
                 update_every: int = 1):
        self.ln_inv_s_init = float(ln_inv_s_init)
        self.ln_inv_s_factor = float(ln_inv_s_factor)
        # Learnable parameter, initialized exactly as the torch module does.
        self.ln_inv_s = jnp.array([self.ln_inv_s_init], dtype=jnp.float32)
        self.start_it = int(start_it)
        self.stop_it = int(stop_it)
        self.update_every = int(update_every)
        self.total_stages = (self.stop_it - self.start_it) // self.update_every
        self.it = None
        self.final_log2_inv_s = float(final_log2_inv_s)
        self.init_log2_inv_s = float(half_log2_inv_s) - (
            float(final_log2_inv_s) - float(half_log2_inv_s))

        # Bake static hyperparameters into the kernel as compile-time consts.
        kernel = functools.partial(
            _var_mix_kernel,
            factor=self.ln_inv_s_factor,
            inv_stop_it=1.0 / self.stop_it,
            start_it=self.start_it,
            update_every=self.update_every,
            inv_total_stages=1.0 / self.total_stages,
            init_log2=self.init_log2_inv_s,
            final_log2=self.final_log2_inv_s,
        )

        call = pl.pallas_call(
            kernel,
            out_shape=jax.ShapeDtypeStruct((1, 1), jnp.float32),
            in_specs=[
                pl.BlockSpec(memory_space=pltpu.SMEM),   # it        (1,) int32
                pl.BlockSpec(memory_space=pltpu.SMEM),   # ln_inv_s  (1,) f32
            ],
            out_specs=pl.BlockSpec(memory_space=pltpu.VMEM),
        )

        # Build the jitted forward ONCE; subsequent calls with different `it`
        # values hit the same compiled executable (Python ints are dynamic,
        # weakly-typed args -> no retrace, no host-side schedule array).
        @jax.jit
        def _forward(it, ln_inv_s):
            it_arr = jnp.reshape(jnp.asarray(it, dtype=jnp.int32), (1,))
            out = call(it_arr, ln_inv_s)
            return jnp.reshape(out, (1,))     # matches torch output shape [1]

        self._forward = _forward

    def set_iter(self, it: int):
        self.it = int(it)

    def __call__(self, it: int = None):
        if it is not None:
            self.set_iter(it)
        return self._forward(self.it, self.ln_inv_s)


if __name__ == "__main__":
    # Deterministic setup: draw the parameter init from PRNGKey(0).
    key = jax.random.PRNGKey(0)
    ln_inv_s_init = float(jax.random.uniform(key, (), minval=0.1, maxval=0.5))

    def ref_forward(it, cfg):
        # Pure float64 numpy reference of the torch forward.
        init_log2 = cfg["half_log2_inv_s"] - (cfg["final_log2_inv_s"] - cfg["half_log2_inv_s"])
        total_stages = (cfg["stop_it"] - cfg["start_it"]) // cfg["update_every"]
        inv_s0 = np.exp(np.float64(ln_inv_s_init) * cfg["ln_inv_s_factor"])
        w0 = 1.0 - it / cfg["stop_it"]
        if it < cfg["start_it"]:
            inv_s1 = 2.0 ** init_log2
        else:
            cur_stage = (it - cfg["start_it"]) // cfg["update_every"]
            w1 = cur_stage / total_stages
            log2_inv_s = (1.0 - w1) * init_log2 + w1 * cfg["final_log2_inv_s"]
            inv_s1 = 2.0 ** log2_inv_s
        return np.array([w0 * inv_s0 + (1.0 - w0) * inv_s1], dtype=np.float32)

    # Two configs: power-of-two and non-power-of-two update_every, iterations
    # before / at / after start_it and at stage boundaries.  Each config reuses
    # a single cached compiled executable across all `it` values.
    configs = [
        dict(ln_inv_s_factor=10.0, stop_it=100, start_it=10,
             final_log2_inv_s=14.0, half_log2_inv_s=9.0, update_every=2),
        dict(ln_inv_s_factor=10.0, stop_it=90, start_it=12,
             final_log2_inv_s=14.0, half_log2_inv_s=9.0, update_every=3),
    ]
    test_its = {0: (0, 5, 10, 11, 37, 50, 99),
                1: (0, 11, 12, 14, 15, 45, 89)}

    for ci, cfg in enumerate(configs):
        module = VarSingleMixHalfLife(ln_inv_s_init=ln_inv_s_init, **cfg)
        for it in test_its[ci]:
            out = module(it)
            jax.block_until_ready(out)
            np.testing.assert_allclose(np.asarray(out), ref_forward(it, cfg),
                                       rtol=2e-5, atol=1e-3)

    print("KERNEL_OK")
</pallas_src>

<mosaic_0001>
module attributes {stable_mosaic.version = 11 : i64} {
  func.func @_var_mix_kernel(%arg0: memref<1xi32, #tpu.memory_space<smem>>, %arg1: memref<1xf32, #tpu.memory_space<smem>>, %arg2: memref<1x1xf32, #tpu.memory_space<vmem>>) attributes {dimension_semantics = [], scalar_prefetch = 0 : i64, scratch_operands = 0 : i64, tpu.core_type = #tpu.core_type<tc>} {
    %c0 = arith.constant 0 : index
    %0 = memref.load %arg0[%c0] : memref<1xi32, #tpu.memory_space<smem>>
    %c10_i32 = arith.constant 10 : i32
    %1 = arith.subi %0, %c10_i32 : i32
    %c0_i32 = arith.constant 0 : i32
    %2 = arith.maxsi %1, %c0_i32 : i32
    %c2_i32 = arith.constant 2 : i32
    %3 = arith.divsi %2, %c2_i32 : i32
    %4 = vector.broadcast %0 : i32 to vector<1x1xi32>
    %5 = arith.sitofp %4 : vector<1x1xi32> to vector<1x1xf32>
    %6 = vector.broadcast %3 : i32 to vector<1x1xi32>
    %7 = arith.sitofp %6 : vector<1x1xi32> to vector<1x1xf32>
    %c0_0 = arith.constant 0 : index
    %8 = memref.load %arg1[%c0_0] : memref<1xf32, #tpu.memory_space<smem>>
    %9 = vector.broadcast %8 : f32 to vector<1x1xf32>
    %cst = arith.constant 1.000000e+01 : f32
    %10 = vector.broadcast %cst : f32 to vector<1x1xf32>
    %11 = arith.mulf %9, %10 : vector<1x1xf32>
    %12 = math.exp %11 : vector<1x1xf32>
    %cst_1 = arith.constant 0.00999999977 : f32
    %13 = vector.broadcast %cst_1 : f32 to vector<1x1xf32>
    %14 = arith.mulf %5, %13 : vector<1x1xf32>
    %cst_2 = arith.constant 1.000000e+00 : f32
    %15 = vector.broadcast %cst_2 : f32 to vector<1x1xf32>
    %16 = arith.subf %15, %14 : vector<1x1xf32>
    %cst_3 = arith.constant 0.0222222228 : f32
    %17 = vector.broadcast %cst_3 : f32 to vector<1x1xf32>
    %18 = arith.mulf %7, %17 : vector<1x1xf32>
    %cst_4 = arith.constant 1.000000e+01 : f32
    %19 = vector.broadcast %cst_4 : f32 to vector<1x1xf32>
    %20 = arith.cmpf olt, %5, %19 : vector<1x1xf32>
    %cst_5 = arith.constant 1.000000e+00 : f32
    %21 = vector.broadcast %cst_5 : f32 to vector<1x1xf32>
    %22 = arith.subf %21, %18 : vector<1x1xf32>
    %cst_6 = arith.constant 4.000000e+00 : f32
    %23 = vector.broadcast %cst_6 : f32 to vector<1x1xf32>
    %24 = arith.mulf %22, %23 : vector<1x1xf32>
    %cst_7 = arith.constant 1.400000e+01 : f32
    %25 = vector.broadcast %cst_7 : f32 to vector<1x1xf32>
    %26 = arith.mulf %18, %25 : vector<1x1xf32>
    %27 = arith.addf %24, %26 : vector<1x1xf32>
    %cst_8 = arith.constant 4.000000e+00 : f32
    %28 = vector.broadcast %cst_8 : f32 to vector<1x1xf32>
    %29 = arith.select %20, %28, %27 : vector<1x1xi1>, vector<1x1xf32>
    %cst_9 = arith.constant 0.693147182 : f32
    %30 = vector.broadcast %cst_9 : f32 to vector<1x1xf32>
    %31 = arith.mulf %29, %30 : vector<1x1xf32>
    %32 = math.exp %31 : vector<1x1xf32>
    %33 = arith.mulf %16, %12 : vector<1x1xf32>
    %cst_10 = arith.constant 1.000000e+00 : f32
    %34 = vector.broadcast %cst_10 : f32 to vector<1x1xf32>
    %35 = arith.subf %34, %16 : vector<1x1xf32>
    %36 = arith.mulf %35, %32 : vector<1x1xf32>
    %37 = arith.addf %33, %36 : vector<1x1xf32>
    %c0_11 = arith.constant 0 : index
    %c0_12 = arith.constant 0 : index
    %38 = vector.load %arg2[%c0_11, %c0_12] : memref<1x1xf32, #tpu.memory_space<vmem>>, vector<1x1xf32>
    tpu.vector_store %arg2[%c0_11, %c0_12], %37 {strides = array<i32>} : memref<1x1xf32, #tpu.memory_space<vmem>>, vector<1x1xf32>,
    return
  }
}

</mosaic_0001>

<llo_original>
// kernel: _forward.1
$region0: #{_forward.1}
  #allocation0 [shape = 'u32[]', space=smem, size = 0x4, offset = 0x4, fixed_abs, tag = 'smem constant byte address 0x4 - core index']
  #allocation1 [shape = 'u32[144,128]{1,0:T(1,128)}', space=vmem, size = 0x12000, scoped, tag = 'internal scratch']
  #allocation2 [shape = 's32[1]{0:T(128)S(6)}', space=smem, size = 0x200, scoped, tag = 'scoped memory for _forward.1']
  #allocation3 [shape = 'f32[1]{0:T(128)S(6)}', space=smem, size = 0x200, scoped, tag = 'scoped memory for _forward.1']
  %s0 = inlined_call_operand.<no memory space> [shape: s32[1], index: 0, kind: input, shape index: {}]
  %s1 = inlined_call_operand.<no memory space> [shape: f32[1], index: 1, kind: input, shape index: {}]
  %s2 = inlined_call_operand.hbm [shape: f32[1,1], index: 2, kind: output, shape index: {}]
  %s3 = sld [smem:[#allocation0]]
  $region18: #{_forward.1} parent=0
    _
  %s5 = ssub.s32 1, %s3
  %s6 = scalar_select 0, %s5, %s3
  %7 = sst [smem:[#allocation2]] %s0
  %8 = sst [smem:[#allocation3]] %s1
  $region1: #{_forward.1} parent=0
    #allocation4 [shape = 'u8[512]{0}', space=vmem, size = 0x400, scoped, tag = 'output window, operand 0, single buffered']
    #allocation5 [shape = 's32[1]{0}', space=sflag, size = 0x4, scoped, tag = 'scoped memory for _forward.1']
    %9 = vsyncpa [#allocation5], 0
    // Predicated region
    $region2: #{_forward.1} parent=1 // pred_check
      _
    $region3: #{_forward.1} parent=1 // pred_check_branch
      %11 = sbr.rel (0) target = $region5
    $region4: #{_forward.1} parent=1 // pred_region
      _
    $region5: #{_forward.1} parent=1 // pred_fallthru
      _
    // Predicated region
    $region6: #{_forward.1} parent=1 // pred_check
      _
    $region7: #{_forward.1} parent=1 // pred_check_branch
      %13 = sbr.rel (0) target = $region9
    $region8: #{_forward.1} parent=1 // pred_region
      _
    $region9: #{_forward.1} parent=1 // pred_fallthru
      _
    %s14 = sld [smem:[#allocation2]]
    %s15 = ssub.s32 %s14, 10
    %p16 = scmp.gt.s32.totalorder %s15, 0
    %s17 = scalar_select %p16, %s15, 0
    %p18 = scmp.lt.s32.totalorder %s17, 0
    %s19 = ssub.s32 0, %s17
    %s20 = scalar_select %p18, %s19, %s17
    %s21 = sshrl.u32 %s20, 1
    %s22 = ssub.s32 0, %s21
    %s23 = scalar_select %p18, %s22, %s21
    %v24 = vstv %s14
    %v25 = vcvt.s32.f32 %v24
    %v26 = vstv %s23
    %v27 = vcvt.s32.f32 %v26
    %s28 = sld [smem:[#allocation3]]
    %v29 = vstv %s28
    %v30 = vmul.f32 %v29, 10.0
    %v31 = vmul.f32 %v30, 1.442695
    %v32 = vpow.pop %v31
    %v33 = vmul.f32 %v25, 0.01
    %v34 = vsub.f32 1.0, %v33
    %v35 = vmul.f32 %v27, 0.022222223
    %vm36 = vcmp.lt.f32.partialorder %v25, 10.0
    %v37 = vsub.f32 1.0, %v35
    %v38 = vmul.f32 %v37, 4.0
    %v39 = vmul.f32 %v35, 14.0
    %v40 = vadd.f32 %v38, %v39
    %v41 = vsel %vm36, 4.0, %v40
    %v42 = vmul.f32 %v41, 0.6931472
    %v43 = vmul.f32 %v42, 1.442695
    %v44 = vpow.pop %v43
    %v45 = vmul.f32 %v34, %v32
    %v46 = vsub.f32 1.0, %v34
    %v47 = vmul.f32 %v46, %v44
    %v48 = vadd.f32 %v45, %v47
    %vm49 = vcmask 0
    %50 = vst.msk [vmem:[#allocation4] sm:$0x1] %vm49, %v48
    // Predicated region
    $region10: #{_forward.1} parent=1 // pred_check
      _
    $region11: #{_forward.1} parent=1 // pred_check_branch
      %52 = sbr.rel (0) target = $region13
    $region12: #{_forward.1} parent=1 // pred_region
      %s54 = ssub.s32 16, 16
      %55 = vsyncadd [#allocation5], %s54
      %s57 = sshll.u32 [#allocation4], 4
      %s58 = int_to_ptr.vmem [resolvable:$true] %s57
      %60 = dma.vmem_to_hbm [thread:$0]  %s58, 16, %s2, [#allocation5]
    $region13: #{_forward.1} parent=1 // pred_fallthru
      _
    // Predicated region
    $region14: #{_forward.1} parent=1 // pred_check
      _
    $region15: #{_forward.1} parent=1 // pred_check_branch
      %62 = sbr.rel (0) target = $region17
    $region16: #{_forward.1} parent=1 // pred_region
      %63 = dma.done [#allocation5], 16
    $region17: #{_forward.1} parent=1 // pred_fallthru
      _
    %64 = vsyncpa [#allocation5], 1

</llo_original>
